<compile_context>
chip_gen: v7x
topology: tpu7x:2x2x1
jax: 0.10.0
libtpu: 0.0.40
codegen_flags: <defaults>
</compile_context>

<pallas_src>
import jax
import jax.numpy as jnp
from jax.experimental import pallas as pl
from jax.experimental.pallas import tpu as pltpu


# ----------------------------------------------------------------------------
# Hardware-aware sizing helpers
# ----------------------------------------------------------------------------
def _tpu_budget():
    """(vmem_capacity_bytes, num_tensorcores) with conservative fallbacks."""
    vmem_cap = 64 * 1024 * 1024          # conservative fallback (v7x-sized)
    num_cores = 1
    try:
        info = pltpu.get_tpu_info()
        vmem_cap = int(getattr(info, "vmem_capacity_bytes", vmem_cap))
        for attr in ("num_cores", "tensorcore_count", "core_count",
                     "num_tensorcores"):
            val = getattr(info, attr, None)
            if val:
                num_cores = int(val)
                break
    except Exception:
        pass
    return vmem_cap, max(1, num_cores)


def _per_step_vmem_bytes(c_block, *, emb_size, in_features, batch,
                         w_itemsize, out_itemsize):
    """Rough per-grid-step VMEM footprint (default double-buffered blocks)."""
    cbe = c_block * emb_size
    two = 2 * cbe
    return (2 * batch * in_features * w_itemsize      # x (grid-invariant, 2 bufs)
            + 2 * in_features * two * w_itemsize      # fused W block
            + 2 * two * 4                             # fused bias block
            + 2 * two * cbe * 4                       # expanded prob weights
            + 2 * cbe * c_block * 4                   # pooling matrix
            + 2 * batch * cbe * out_itemsize          # c_emb slab
            + 2 * batch * c_block * 4                 # c_pred slab
            + 2 * batch * (two + cbe) * 4)            # ctx / p_exp working set


def _pick_c_block(n_concepts, emb_size, *, in_features, batch,
                  w_itemsize, out_itemsize, vmem_budget, num_cores):
    """Largest divisor of n_concepts whose fused block fits the VMEM budget.

    Preference order:
      * lane-aligned c_emb slab (c_block*E % 128 == 0) or G == 1 (full-dim block)
      * on multi-core chips (v7x): G divisible by num_cores, then >=2 steps/core
      * larger c_block (fewer grid steps / less per-step overhead)
    On single-core chips (v5e/v6e) G=1 full fusion is allowed and preferred.
    """
    divisors = [d for d in range(1, n_concepts + 1) if n_concepts % d == 0]

    def fp(d):
        return _per_step_vmem_bytes(d, emb_size=emb_size,
                                    in_features=in_features, batch=batch,
                                    w_itemsize=w_itemsize,
                                    out_itemsize=out_itemsize)

    fits = [d for d in divisors if fp(d) <= vmem_budget] or [1]

    def key(d):
        cbe = d * emb_size
        g = n_concepts // d
        lane_ok = (cbe % 128 == 0) or (g == 1)
        if num_cores > 1:
            return (lane_ok, g % num_cores == 0, g >= 2 * num_cores, d)
        return (lane_ok, d)

    return max(fits, key=key)


# ----------------------------------------------------------------------------
# One-time weight packing (hoist out of the per-call path)
# ----------------------------------------------------------------------------
def pack_concept_weights(w_stack, b_stack, wp, bp, *, c_block,
                         compute_dtype=jnp.float32):
    """Re-lay the per-concept weights into fused lane-dense blocks.

    w_stack: (C, F, 2E), b_stack: (C, 1, 2E), wp: (2E, 1), bp: (1, 1)
    Returns (w_blk, b_blk, wp_exp, pool, bp2) where per block of c_block concepts
    the context columns are [pos halves concept-major | neg halves concept-major].
    """
    w_stack = jnp.asarray(w_stack)
    b_stack = jnp.asarray(b_stack)
    wp = jnp.asarray(wp)
    bp = jnp.asarray(bp)

    C, F, twoE = w_stack.shape
    E = twoE // 2
    assert C % c_block == 0
    G = C // c_block
    cbe = c_block * E

    w_pos = (w_stack[:, :, :E].reshape(G, c_block, F, E)
             .transpose(0, 2, 1, 3).reshape(G, F, cbe))
    w_neg = (w_stack[:, :, E:].reshape(G, c_block, F, E)
             .transpose(0, 2, 1, 3).reshape(G, F, cbe))
    w_blk = jnp.concatenate([w_pos, w_neg], axis=-1).astype(compute_dtype)

    b2 = b_stack.reshape(C, twoE)
    b_pos = b2[:, :E].reshape(G, cbe)
    b_neg = b2[:, E:].reshape(G, cbe)
    b_blk = jnp.concatenate([b_pos, b_neg], axis=-1)[:, None, :].astype(jnp.float32)

    eye = jnp.eye(c_block, dtype=jnp.float32)
    ones_row = jnp.ones((1, E), jnp.float32)
    # Expanded prob-predictor weights (2*CBE, CBE): column j (concept j//E) carries
    # wp's pos/neg halves replicated across that concept's E lanes -> one lane-dense
    # f32 matmul yields every concept's logit on each of its embedding lanes.
    wp_exp = jnp.concatenate(
        [jnp.kron(eye, wp[:E, :] @ ones_row),
         jnp.kron(eye, wp[E:, :] @ ones_row)], axis=0).astype(jnp.float32)
    # Pooling matrix (CBE, c_block): average each concept's E identical prob lanes
    # back to a single per-concept probability (exact, since all E copies agree).
    pool = jnp.kron(eye, jnp.ones((E, 1), jnp.float32) / float(E))
    bp2 = bp.reshape(1, 1).astype(jnp.float32)

    return w_blk, b_blk, wp_exp, pool, bp2


# ----------------------------------------------------------------------------
# Kernel
# ----------------------------------------------------------------------------
def _concept_block_kernel(x_ref, w_ref, b_ref, wpx_ref, pool_ref, bp_ref,
                          emb_ref, pred_ref):
    # x_ref:    (B, F)              input, shared by every grid step
    # w_ref:    (1, F, 2*CBE)       this block's fused weights (pos|neg layout)
    # b_ref:    (1, 1, 2*CBE)       this block's fused bias
    # wpx_ref:  (2*CBE, CBE)        expanded prob-predictor weights (f32)
    # pool_ref: (CBE, C_BLOCK)      lane -> concept averaging matrix (f32)
    # bp_ref:   (1, 1) in SMEM      prob-predictor bias (scalar)
    # emb_ref:  (B, CBE)            lane-dense c_emb slab for this block
    # pred_ref: (1, B, C_BLOCK)     c_pred slab for this block (full trailing dims)
    cbe = pool_ref.shape[0]

    x = x_ref[...]
    w = w_ref[0]                                              # (F, 2*CBE)
    ctx = jnp.dot(x, w, preferred_element_type=jnp.float32) + b_ref[0]
    # LeakyReLU, default negative_slope = 0.01
    ctx = jnp.where(ctx > 0, ctx, 0.01 * ctx)                 # (B, 2*CBE) f32

    # Merged prob path: one lane-dense f32 matmul gives every concept's logit on
    # each of its E lanes; sigmoid on the EUP; no f32->bf16 cast anywhere.
    logit_exp = jnp.dot(ctx, wpx_ref[...],
                        preferred_element_type=jnp.float32) + bp_ref[0, 0]
    p_exp = jax.nn.sigmoid(logit_exp)                         # (B, CBE)

    ctx_pos = ctx[:, :cbe]                                    # aligned lane slice
    ctx_neg = ctx[:, cbe:]                                    # aligned lane slice
    emb_ref[...] = (ctx_neg + p_exp * (ctx_pos - ctx_neg)).astype(emb_ref.dtype)

    # Exact per-concept probability (average of E identical lanes).
    pred_ref[0] = jnp.dot(p_exp, pool_ref[...],
                          preferred_element_type=jnp.float32)


# ----------------------------------------------------------------------------
# Forward wrappers
# ----------------------------------------------------------------------------
def concept_embedding_forward(x, w_blk, b_blk, wp_exp, pool, bp2, *,
                              emb_size, out_dtype=jnp.float32,
                              vmem_limit_bytes=None):
    """Run the fused forward given pre-packed weights (see pack_concept_weights)."""
    B, F = x.shape
    G, _, two_cbe = w_blk.shape
    cbe = two_cbe // 2
    c_block = cbe // emb_size
    C = G * c_block

    if vmem_limit_bytes is None:
        vmem_cap, _ = _tpu_budget()
        vmem_limit_bytes = int(0.8 * vmem_cap)   # never exceeds physical VMEM (v7x: 64 MiB)

    x_c = x.astype(w_blk.dtype)

    emb_out, pred_out = pl.pallas_call(
        _concept_block_kernel,
        out_shape=(
            jax.ShapeDtypeStruct((B, C * emb_size), out_dtype),
            jax.ShapeDtypeStruct((G, B, c_block), jnp.float32),
        ),
        grid_spec=pltpu.PrefetchScalarGridSpec(
            num_scalar_prefetch=0,
            grid=(G,),
            in_specs=[
                pl.BlockSpec((B, F), lambda g: (0, 0)),                 # x (shared)
                pl.BlockSpec((1, F, two_cbe), lambda g: (g, 0, 0)),     # fused W block
                pl.BlockSpec((1, 1, two_cbe), lambda g: (g, 0, 0)),     # fused b block
                pl.BlockSpec((two_cbe, cbe), lambda g: (0, 0)),         # expanded wp (shared)
                pl.BlockSpec((cbe, c_block), lambda g: (0, 0)),         # pooling (shared)
                pl.BlockSpec(memory_space=pltpu.MemorySpace.SMEM),      # bp scalar
            ],
            out_specs=[
                pl.BlockSpec((B, cbe), lambda g: (0, g)),               # lane-dense c_emb
                pl.BlockSpec((1, B, c_block), lambda g: (g, 0, 0)),     # full-dim pred slab
            ],
        ),
        compiler_params=pltpu.CompilerParams(
            dimension_semantics=("parallel",),
            vmem_limit_bytes=vmem_limit_bytes),
    )(x_c, w_blk, b_blk, wp_exp, pool, bp2)

    c_emb = emb_out.reshape(B, C, emb_size)                   # lane-dense slab -> (B,C,E)
    c_pred = pred_out.transpose(1, 0, 2).reshape(B, C)        # (G,B,cb) -> (B,C)
    return c_emb, c_pred


def make_concept_embedding(w_stack, b_stack, wp, bp, *, batch_hint=128,
                           compute_dtype=jnp.float32, out_dtype=jnp.float32,
                           c_block=None):
    """Pack weights once (model-setup time) and return a jit-able forward(x)."""
    w_stack = jnp.asarray(w_stack)
    C, F, twoE = w_stack.shape
    E = twoE // 2

    vmem_cap, num_cores = _tpu_budget()
    vmem_limit = int(0.8 * vmem_cap)

    if c_block is None:
        c_block = _pick_c_block(
            C, E, in_features=F, batch=max(int(batch_hint), 8),
            w_itemsize=jnp.dtype(compute_dtype).itemsize,
            out_itemsize=jnp.dtype(out_dtype).itemsize,
            vmem_budget=vmem_limit // 2, num_cores=num_cores)
    assert C % c_block == 0, "c_block must divide n_concepts"

    packed = pack_concept_weights(w_stack, b_stack, wp, bp,
                                  c_block=c_block, compute_dtype=compute_dtype)

    def forward(x):
        return concept_embedding_forward(x, *packed, emb_size=E,
                                         out_dtype=out_dtype,
                                         vmem_limit_bytes=vmem_limit)

    return forward


# ----------------------------------------------------------------------------
# Pure-JAX reference (mirrors the PyTorch module's default forward)
# ----------------------------------------------------------------------------
def _reference_forward(x, w_stack, b_stack, wp, bp):
    embs, preds = [], []
    E = w_stack.shape[-1] // 2
    for i in range(w_stack.shape[0]):
        ctx = x @ w_stack[i] + b_stack[i]
        ctx = jnp.where(ctx > 0, ctx, 0.01 * ctx)
        p = jax.nn.sigmoid(ctx @ wp + bp[0, 0])
        embs.append(ctx[:, :E] * p + ctx[:, E:] * (1.0 - p))
        preds.append(p)
    return jnp.stack(embs, axis=1), jnp.concatenate(preds, axis=1)


if __name__ == "__main__":
    # Small, module-consistent shapes (c_block*E lands on a 128-lane boundary).
    batch = 16
    in_features = 32
    n_concepts = 16
    emb_size = 16

    key = jax.random.PRNGKey(0)
    kx, kw, kb, kwp, kbp = jax.random.split(key, 5)

    x = jax.random.normal(kx, (batch, in_features), dtype=jnp.float32)
    w_stack = (jax.random.normal(kw, (n_concepts, in_features, 2 * emb_size),
                                 dtype=jnp.float32) * 0.1)
    b_stack = (jax.random.normal(kb, (n_concepts, 1, 2 * emb_size),
                                 dtype=jnp.float32) * 0.1)
    wp = jax.random.normal(kwp, (2 * emb_size, 1), dtype=jnp.float32) * 0.1
    bp = jax.random.normal(kbp, (1, 1), dtype=jnp.float32) * 0.1

    ref_emb, ref_pred = _reference_forward(x, w_stack, b_stack, wp, bp)

    # f32 path: weights packed once (hoisted re-layout), forward jitted.
    fwd_f32 = jax.jit(make_concept_embedding(w_stack, b_stack, wp, bp,
                                              batch_hint=batch))
    c_emb, c_pred = fwd_f32(x)
    jax.block_until_ready((c_emb, c_pred))

    assert c_emb.shape == (batch, n_concepts, emb_size)
    assert c_pred.shape == (batch, n_concepts)
    assert jnp.allclose(c_emb, ref_emb, atol=1e-4, rtol=1e-4)
    assert jnp.allclose(c_pred, ref_pred, atol=1e-4, rtol=1e-4)

    # bf16-weight path (v6e/v7x MXU rate, halved weight traffic); prob path and
    # accumulation stay in f32.
    fwd_bf16 = jax.jit(make_concept_embedding(w_stack, b_stack, wp, bp,
                                               batch_hint=batch,
                                               compute_dtype=jnp.bfloat16))
    c_emb_bf, c_pred_bf = fwd_bf16(x)
    jax.block_until_ready((c_emb_bf, c_pred_bf))
    assert jnp.allclose(c_emb_bf, ref_emb, atol=1e-1, rtol=1e-1)
    assert jnp.allclose(c_pred_bf, ref_pred, atol=1e-1, rtol=1e-1)

    print("KERNEL_OK")
</pallas_src>

<mosaic_0001>
module attributes {stable_mosaic.version = 11 : i64} {
  func.func @_concept_block_kernel(%arg0: i32, %arg1: memref<16x32xf32, #tpu.memory_space<vmem>>, %arg2: memref<1x32x512xf32, #tpu.memory_space<vmem>>, %arg3: memref<1x1x512xf32, #tpu.memory_space<vmem>>, %arg4: memref<512x256xf32, #tpu.memory_space<vmem>>, %arg5: memref<256x16xf32, #tpu.memory_space<vmem>>, %arg6: memref<1x1xf32, #tpu.memory_space<smem>>, %arg7: memref<16x256xf32, #tpu.memory_space<vmem>>, %arg8: memref<1x16x16xf32, #tpu.memory_space<vmem>>) attributes {dimension_semantics = [#tpu.dimension_semantics<parallel>], iteration_bounds = array<i64: 1>, scalar_prefetch = 0 : i64, scratch_operands = 0 : i64, tpu.core_type = #tpu.core_type<tc>, window_params = [{pipeline_mode = #tpu.pipeline_mode<synchronous>, transform_indices = @transform_0, window_bounds = array<i64: 16, 32>}, {transform_indices = @transform_1, window_bounds = array<i64: 1, 32, 512>}, {transform_indices = @transform_2, window_bounds = array<i64: 1, 1, 512>}, {pipeline_mode = #tpu.pipeline_mode<synchronous>, transform_indices = @transform_3, window_bounds = array<i64: 512, 256>}, {pipeline_mode = #tpu.pipeline_mode<synchronous>, transform_indices = @transform_4, window_bounds = array<i64: 256, 16>}, {transform_indices = @transform_5, window_bounds = array<i64: 1, 1>}, {transform_indices = @transform_6, window_bounds = array<i64: 16, 256>}, {transform_indices = @transform_7, window_bounds = array<i64: 1, 16, 16>}]} {
    %c0 = arith.constant 0 : index
    %c0_0 = arith.constant 0 : index
    %0 = vector.load %arg1[%c0, %c0_0] : memref<16x32xf32, #tpu.memory_space<vmem>>, vector<16x32xf32>
    %c0_1 = arith.constant 0 : index
    %c0_2 = arith.constant 0 : index
    %c0_3 = arith.constant 0 : index
    %1 = vector.load %arg2[%c0_1, %c0_2, %c0_3] : memref<1x32x512xf32, #tpu.memory_space<vmem>>, vector<1x32x512xf32>
    %2 = vector.shape_cast %1 : vector<1x32x512xf32> to vector<32x512xf32>
    %cst = arith.constant dense<0.000000e+00> : vector<16x512xf32>
    %3 = tpu.matmul %0, %2, %cst {dimension_numbers = #tpu.dot_dimension_numbers<[1], [0], [0], [1], [0, 0, 1, 1], [], []>} : vector<16x32xf32>, vector<32x512xf32>, vector<16x512xf32> -> vector<16x512xf32>
    %c0_4 = arith.constant 0 : index
    %c0_5 = arith.constant 0 : index
    %c0_6 = arith.constant 0 : index
    %4 = vector.load %arg3[%c0_4, %c0_5, %c0_6] : memref<1x1x512xf32, #tpu.memory_space<vmem>>, vector<1x1x512xf32>
    %5 = vector.shape_cast %4 : vector<1x1x512xf32> to vector<1x512xf32>
    %6 = vector.broadcast %5 : vector<1x512xf32> to vector<16x512xf32>
    %7 = arith.addf %3, %6 : vector<16x512xf32>
    %cst_7 = arith.constant 0.000000e+00 : f32
    %8 = vector.broadcast %cst_7 : f32 to vector<16x512xf32>
    %9 = arith.cmpf ogt, %7, %8 : vector<16x512xf32>
    %cst_8 = arith.constant 0.00999999977 : f32
    %10 = vector.broadcast %cst_8 : f32 to vector<16x512xf32>
    %11 = arith.mulf %10, %7 : vector<16x512xf32>
    %12 = arith.select %9, %7, %11 : vector<16x512xi1>, vector<16x512xf32>
    %c0_9 = arith.constant 0 : index
    %c0_10 = arith.constant 0 : index
    %13 = vector.load %arg4[%c0_9, %c0_10] : memref<512x256xf32, #tpu.memory_space<vmem>>, vector<512x256xf32>
    %cst_11 = arith.constant dense<0.000000e+00> : vector<16x256xf32>
    %14 = tpu.matmul %12, %13, %cst_11 {dimension_numbers = #tpu.dot_dimension_numbers<[1], [0], [0], [1], [0, 0, 1, 1], [], []>} : vector<16x512xf32>, vector<512x256xf32>, vector<16x256xf32> -> vector<16x256xf32>
    %c0_12 = arith.constant 0 : index
    %c0_13 = arith.constant 0 : index
    %15 = memref.load %arg6[%c0_12, %c0_13] : memref<1x1xf32, #tpu.memory_space<smem>>
    %16 = vector.broadcast %15 : f32 to vector<16x256xf32>
    %17 = arith.addf %14, %16 : vector<16x256xf32>
    %18 = arith.negf %17 : vector<16x256xf32>
    %19 = math.exp %18 : vector<16x256xf32>
    %cst_14 = arith.constant 1.000000e+00 : f32
    %20 = vector.broadcast %cst_14 : f32 to vector<16x256xf32>
    %21 = arith.addf %20, %19 : vector<16x256xf32>
    %22 = arith.divf %20, %21 : vector<16x256xf32>
    %23 = vector.extract_strided_slice %12 {offsets = [0, 0], sizes = [16, 256], strides = [1, 1]} : vector<16x512xf32> to vector<16x256xf32>
    %24 = vector.extract_strided_slice %12 {offsets = [0, 256], sizes = [16, 256], strides = [1, 1]} : vector<16x512xf32> to vector<16x256xf32>
    %25 = arith.subf %23, %24 : vector<16x256xf32>
    %26 = arith.mulf %22, %25 : vector<16x256xf32>
    %27 = arith.addf %24, %26 : vector<16x256xf32>
    %c0_15 = arith.constant 0 : index
    %c0_16 = arith.constant 0 : index
    %28 = vector.load %arg7[%c0_15, %c0_16] : memref<16x256xf32, #tpu.memory_space<vmem>>, vector<16x256xf32>
    tpu.vector_store %arg7[%c0_15, %c0_16], %27 {strides = array<i32>} : memref<16x256xf32, #tpu.memory_space<vmem>>, vector<16x256xf32>,
    %c0_17 = arith.constant 0 : index
    %c0_18 = arith.constant 0 : index
    %29 = vector.load %arg5[%c0_17, %c0_18] : memref<256x16xf32, #tpu.memory_space<vmem>>, vector<256x16xf32>
    %cst_19 = arith.constant dense<0.000000e+00> : vector<16x16xf32>
    %30 = tpu.matmul %22, %29, %cst_19 {dimension_numbers = #tpu.dot_dimension_numbers<[1], [0], [0], [1], [0, 0, 1, 1], [], []>} : vector<16x256xf32>, vector<256x16xf32>, vector<16x16xf32> -> vector<16x16xf32>
    %c0_20 = arith.constant 0 : index
    %c0_21 = arith.constant 0 : index
    %c0_22 = arith.constant 0 : index
    %31 = vector.load %arg8[%c0_20, %c0_21, %c0_22] : memref<1x16x16xf32, #tpu.memory_space<vmem>>, vector<1x16x16xf32>
    %32 = vector.shape_cast %31 : vector<1x16x16xf32> to vector<16x16xf32>
    %33 = vector.shape_cast %30 : vector<16x16xf32> to vector<1x16x16xf32>
    tpu.vector_store %arg8[%c0_20, %c0_21, %c0_22], %33 {strides = array<i32>} : memref<1x16x16xf32, #tpu.memory_space<vmem>>, vector<1x16x16xf32>,
    return
  }
  func.func @transform_0(%arg0: i32) -> (i32, i32) {
    %c0_i32 = arith.constant 0 : i32
    %c0_i32_0 = arith.constant 0 : i32
    %c0_i32_1 = arith.constant 0 : i32
    return %c0_i32, %c0_i32_0 : i32, i32
  }
  func.func @transform_1(%arg0: i32) -> (i32, i32, i32) {
    %c0_i32 = arith.constant 0 : i32
    %c0_i32_0 = arith.constant 0 : i32
    %c0_i32_1 = arith.constant 0 : i32
    return %arg0, %c0_i32, %c0_i32_0 : i32, i32, i32
  }
  func.func @transform_2(%arg0: i32) -> (i32, i32, i32) {
    %c0_i32 = arith.constant 0 : i32
    %c0_i32_0 = arith.constant 0 : i32
    %c0_i32_1 = arith.constant 0 : i32
    return %arg0, %c0_i32, %c0_i32_0 : i32, i32, i32
  }
  func.func @transform_3(%arg0: i32) -> (i32, i32) {
    %c0_i32 = arith.constant 0 : i32
    %c0_i32_0 = arith.constant 0 : i32
    %c0_i32_1 = arith.constant 0 : i32
    return %c0_i32, %c0_i32_0 : i32, i32
  }
  func.func @transform_4(%arg0: i32) -> (i32, i32) {
    %c0_i32 = arith.constant 0 : i32
    %c0_i32_0 = arith.constant 0 : i32
    %c0_i32_1 = arith.constant 0 : i32
    return %c0_i32, %c0_i32_0 : i32, i32
  }
  func.func @transform_5(%arg0: i32) -> (i32, i32) {
    %c0_i32 = arith.constant 0 : i32
    %c0_i32_0 = arith.constant 0 : i32
    %c0_i32_1 = arith.constant 0 : i32
    return %c0_i32, %c0_i32_0 : i32, i32
  }
  func.func @transform_6(%arg0: i32) -> (i32, i32) {
    %c0_i32 = arith.constant 0 : i32
    %c0_i32_0 = arith.constant 0 : i32
    return %c0_i32, %arg0 : i32, i32
  }
  func.func @transform_7(%arg0: i32) -> (i32, i32, i32) {
    %c0_i32 = arith.constant 0 : i32
    %c0_i32_0 = arith.constant 0 : i32
    %c0_i32_1 = arith.constant 0 : i32
    return %arg0, %c0_i32, %c0_i32_0 : i32, i32, i32
  }
}

</mosaic_0001>

<llo_original>
// kernel: forward.1
$region0: #{forward.1}
  #allocation0 [shape = 'u32[]', space=smem, size = 0x4, offset = 0x4, fixed_abs, tag = 'smem constant byte address 0x4 - core index']
  #allocation1 [shape = 'u32[144,128]{1,0:T(1,128)}', space=vmem, size = 0x12000, scoped, tag = 'internal scratch']
  #allocation2 [shape = 'f32[1,1]{1,0:T(1,128)S(6)}', space=smem, size = 0x200, scoped, tag = 'scoped memory for forward.1']
  %s0 = inlined_call_operand.hbm [shape: f32[16,32], index: 0, kind: input, shape index: {}]
  %s1 = inlined_call_operand.hbm [shape: f32[1,32,512], index: 1, kind: input, shape index: {}]
  %s2 = inlined_call_operand.vmem [shape: f32[1,1,512], index: 2, kind: input, shape index: {}]
  %s3 = inlined_call_operand.hbm [shape: f32[512,256], index: 3, kind: input, shape index: {}]
  %s4 = inlined_call_operand.hbm [shape: f32[256,16], index: 4, kind: input, shape index: {}]
  %s5 = inlined_call_operand.<no memory space> [shape: f32[1,1], index: 5, kind: input, shape index: {}]
  %s6 = inlined_call_operand.vmem [shape: f32[16,256], index: 6, kind: output, shape index: {0}]
  %s7 = inlined_call_operand.hbm [shape: f32[1,16,16], index: 7, kind: output, shape index: {1}]
  %8 = xla_tuple %s6, %s7
  %s9 = sld [smem:[#allocation0]]
  $region58: #{forward.1} parent=0
    _
  %s11 = ssub.s32 1, %s9
  %s12 = scalar_select 0, %s11, %s9
  %13 = sst [smem:[#allocation2]] %s5
  $region1: #{forward.1} parent=0
    #allocation3 [shape = 'u8[8192]{0}', space=vmem, size = 0x2000, scoped, tag = 'input window, operand 0, single buffered']
    #allocation4 [shape = 's32[1]{0}', space=sflag, size = 0x4, scoped, tag = 'scoped memory for forward.1']
    #allocation5 [shape = 's32[1]{0}', space=sflag, size = 0x4, scoped, tag = 'scoped memory for forward.1']
    #allocation6 [shape = 'u8[65536]{0}', space=vmem, size = 0x10000, scoped, tag = 'input window, operand 1, single buffered']
    #allocation7 [shape = 's32[1]{0}', space=sflag, size = 0x4, scoped, tag = 'scoped memory for forward.1']
    #allocation8 [shape = 'u8[524288]{0}', space=vmem, size = 0x80000, scoped, tag = 'input window, operand 3, single buffered']
    #allocation9 [shape = 'u8[131072]{0}', space=vmem, size = 0x20000, scoped, tag = 'input window, operand 4, single buffered']
    #allocation10 [shape = 's32[1]{0}', space=sflag, size = 0x4, scoped, tag = 'scoped memory for forward.1']
    #allocation11 [shape = 'u8[8192]{0}', space=vmem, size = 0x2000, scoped, tag = 'output window, operand 1, single buffered']
    %14 = vsyncpa [#allocation4], 0
    %15 = vsyncpa [#allocation7], 0
    %16 = vsyncpa [#allocation10], 0
    %17 = vsyncpa [#allocation5], 0
    // Predicated region
    $region2: #{forward.1} parent=1 // pred_check
      _
    $region3: #{forward.1} parent=1 // pred_check_branch
      %19 = sbr.rel (0) target = $region5
    $region4: #{forward.1} parent=1 // pred_region
      %s21 = ssub.s32 256, 256
      %22 = vsyncadd [#allocation4], %s21
      %s23 = sshll.u32 [#allocation3], 4
      %s24 = int_to_ptr.vmem [resolvable:$true] %s23
      %29 = dma.hbm_to_vmem [thread:$0]  %s0, 256, %s24, [#allocation4], 128, 128, 8
    $region5: #{forward.1} parent=1 // pred_fallthru
      _
    // Predicated region
    $region6: #{forward.1} parent=1 // pred_check
      _
    $region7: #{forward.1} parent=1 // pred_check_branch
      %31 = sbr.rel (0) target = $region9
    $region8: #{forward.1} parent=1 // pred_region
      %s33 = ssub.s32 2048, 2048
      %34 = vsyncadd [#allocation7], %s33
      %s35 = sshll.u32 [#allocation6], 4
      %s36 = int_to_ptr.vmem [resolvable:$true] %s35
      %41 = dma.hbm_to_vmem [thread:$0]  %s1, 2048, %s36, [#allocation7], 512, 512, 32
    $region9: #{forward.1} parent=1 // pred_fallthru
      _
    // Predicated region
    $region10: #{forward.1} parent=1 // pred_check
      _
    $region11: #{forward.1} parent=1 // pred_check_branch
      %43 = sbr.rel (0) target = $region13
    $region12: #{forward.1} parent=1 // pred_region
      _
    $region13: #{forward.1} parent=1 // pred_fallthru
      _
    // Predicated region
    $region14: #{forward.1} parent=1 // pred_check
      _
    $region15: #{forward.1} parent=1 // pred_check_branch
      %45 = sbr.rel (0) target = $region17
    $region16: #{forward.1} parent=1 // pred_region
      %s47 = ssub.s32 16384, 16384
      %48 = vsyncadd [#allocation7], %s47
      %s49 = sshll.u32 [#allocation8], 4
      %s50 = int_to_ptr.vmem [resolvable:$true] %s49
      %55 = dma.hbm_to_vmem [thread:$0]  %s3, 16384, %s50, [#allocation7], 256, 256, 16
    $region17: #{forward.1} parent=1 // pred_fallthru
      _
    // Predicated region
    $region18: #{forward.1} parent=1 // pred_check
      _
    $region19: #{forward.1} parent=1 // pred_check_branch
      %57 = sbr.rel (0) target = $region21
    $region20: #{forward.1} parent=1 // pred_region
      %s59 = ssub.s32 4096, 4096
      %60 = vsyncadd [#allocation10], %s59
      %s61 = sshll.u32 [#allocation9], 4
      %s62 = int_to_ptr.vmem [resolvable:$true] %s61
      %67 = dma.hbm_to_vmem [thread:$0]  %s4, 4096, %s62, [#allocation10], 128, 128, 8
    $region21: #{forward.1} parent=1 // pred_fallthru
      _
    // Predicated region
    $region22: #{forward.1} parent=1 // pred_check
      _
    $region23: #{forward.1} parent=1 // pred_check_branch
      %69 = sbr.rel (0) target = $region25
    $region24: #{forward.1} parent=1 // pred_region
      _
    $region25: #{forward.1} parent=1 // pred_fallthru
      _
    // Predicated region
    $region26: #{forward.1} parent=1 // pred_check
      _
    $region27: #{forward.1} parent=1 // pred_check_branch
      %71 = sbr.rel (0) target = $region29
    $region28: #{forward.1} parent=1 // pred_region
      %72 = dma.done [#allocation4], 256
    $region29: #{forward.1} parent=1 // pred_fallthru
      _
    // Predicated region
    $region30: #{forward.1} parent=1 // pred_check
      _
    $region31: #{forward.1} parent=1 // pred_check_branch
      %74 = sbr.rel (0) target = $region33
    $region32: #{forward.1} parent=1 // pred_region
      %75 = dma.done [#allocation7], 2048
    $region33: #{forward.1} parent=1 // pred_fallthru
      _
    // Predicated region
    $region34: #{forward.1} parent=1 // pred_check
      _
    $region35: #{forward.1} parent=1 // pred_check_branch
      %77 = sbr.rel (0) target = $region37
    $region36: #{forward.1} parent=1 // pred_region
      %78 = dma.done [#allocation7], 16384
    $region37: #{forward.1} parent=1 // pred_fallthru
      _
    // Predicated region
    $region38: #{forward.1} parent=1 // pred_check
      _
    $region39: #{forward.1} parent=1 // pred_check_branch
      %80 = sbr.rel (0) target = $region41
    $region40: #{forward.1} parent=1 // pred_region
      %81 = dma.done [#allocation10], 4096
    $region41: #{forward.1} parent=1 // pred_fallthru
      _
    %v82 = vld [vmem:[#allocation3] sm:$0xff]
    %v83 = vld [vmem:[#allocation3 + $0x8] sm:$0xff]
    %v84 = vld [vmem:[#allocation6] sm:$0xff]
    %v85 = vld [vmem:[#allocation6 + $0x8] sm:$0xff]
    %v86 = vld [vmem:[#allocation6 + $0x10] sm:$0xff]
    %v87 = vld [vmem:[#allocation6 + $0x18] sm:$0xff]
    %v88 = vld [vmem:[#allocation6 + $0x20] sm:$0xff]
    %v89 = vld [vmem:[#allocation6 + $0x28] sm:$0xff]
    %v90 = vld [vmem:[#allocation6 + $0x30] sm:$0xff]
    %v91 = vld [vmem:[#allocation6 + $0x38] sm:$0xff]
    %v92 = vld [vmem:[#allocation6 + $0x40] sm:$0xff]
    %v93 = vld [vmem:[#allocation6 + $0x48] sm:$0xff]
    %v94 = vld [vmem:[#allocation6 + $0x50] sm:$0xff]
    %v95 = vld [vmem:[#allocation6 + $0x58] sm:$0xff]
    %v96 = vld [vmem:[#allocation6 + $0x60] sm:$0xff]
    %v97 = vld [vmem:[#allocation6 + $0x68] sm:$0xff]
    %v98 = vld [vmem:[#allocation6 + $0x70] sm:$0xff]
    %v99 = vld [vmem:[#allocation6 + $0x78] sm:$0xff]
    %v100 = vld [vmem:[%s2] sm:$0xf]
    %v102 = vlaneseq
    %v103 = vshrl.u32 %v102, 7
    %v104 = vsub.s32 0, %v103
    %v105 = vrot.slane %v100, %v104
    %v106 = vlaneseq
    %v107 = vshrl.u32 %v106, 7
    %v108 = vsub.s32 1, %v107
    %v109 = vrot.slane %v100, %v108
    %v110 = vlaneseq
    %v111 = vshrl.u32 %v110, 7
    %v112 = vsub.s32 2, %v111
    %v113 = vrot.slane %v100, %v112
    %v114 = vlaneseq
    %v115 = vshrl.u32 %v114, 7
    %v116 = vsub.s32 3, %v115
    %v117 = vrot.slane %v100, %v116
    %vm122 = vcmask 261120
    %v124 = vsel %vm122, %v82, 0
    %v127 = vsel %vm122, %v83, 0
    %129 = vmatprep.subr.mxu0 %v85
    %130 = vmatpush1.msra.mxu0 %v84
    %131 = vmatprep.subr.mxu0 %v89
    %132 = vmatpush1.msra.mxu0 %v88
    %133 = vmatprep.subr.mxu0 %v93
    %134 = vmatpush1.msra.mxu0 %v92
    %135 = vmatprep.subr.mxu0 %v97
    %136 = vmatpush1.msra.mxu0 %v96
    %137 = vmatprep.subr.mxu0 0.0
    %138 = vmatpush1.msra.mxu0 0.0
    %139 = vmatprep.subr.mxu0 0.0
    %140 = vmatpush1.msra.mxu0 0.0
    %141 = vmatprep.subr.mxu0 0.0
    %142 = vmatpush1.msra.mxu0 0.0
    %143 = vmatprep.subr.mxu0 0.0
    %144 = vmatpush1.msra.mxu0 0.0
    %145 = vmatprep.subr.mxu0 0.0
    %146 = vmatpush1.msra.mxu0 0.0
    %147 = vmatprep.subr.mxu0 0.0
    %148 = vmatpush1.msra.mxu0 0.0
    %149 = vmatprep.subr.mxu0 0.0
    %150 = vmatpush1.msra.mxu0 0.0
    %151 = vmatprep.subr.mxu0 0.0
    %152 = vmatpush1.msra.mxu0 0.0
    %153 = vmatprep.subr.mxu0 0.0
    %154 = vmatpush1.msra.mxu0 0.0
    %155 = vmatprep.subr.mxu0 0.0
    %156 = vmatpush1.msra.mxu0 0.0
    %157 = vmatprep.subr.mxu0 0.0
    %158 = vmatpush1.msra.mxu0 0.0
    %159 = vmatprep.subr.mxu0 0.0
    %160 = vmatpush1.msra.mxu0 0.0
    %161 = vmatprep.subr.mxu0 0.0
    %162 = vmatpush1.msra.mxu0 0.0
    %163 = vmatprep.subr.mxu0 0.0
    %164 = vmatpush1.msra.mxu0 0.0
    %165 = vmatprep.subr.mxu0 0.0
    %166 = vmatpush1.msra.mxu0 0.0
    %167 = vmatprep.subr.mxu0 0.0
    %168 = vmatpush1.msra.mxu0 0.0
    %169 = vmatprep.subr.mxu0 0.0
    %170 = vmatpush1.msra.mxu0 0.0
    %171 = vmatprep.subr.mxu0 0.0
    %172 = vmatpush1.msra.mxu0 0.0
    %173 = vmatprep.subr.mxu0 0.0
    %174 = vmatpush1.msra.mxu0 0.0
    %175 = vmatprep.subr.mxu0 0.0
    %176 = vmatpush1.msra.mxu0 0.0
    %177 = vmatprep.subr.mxu0 0.0
    %178 = vmatpush1.msra.mxu0 0.0
    %179 = vmatprep.subr.mxu0 0.0
    %180 = vmatpush1.msra.mxu0 0.0
    %181 = vmatprep.subr.mxu0 0.0
    %182 = vmatpush1.msra.mxu0 0.0
    %183 = vmatprep.subr.mxu0 0.0
    %184 = vmatpush1.msra.mxu0 0.0
    %185 = vmatprep.subr.mxu0 0.0
    %186 = vmatpush1.msra.mxu0 0.0
    %187 = vmatprep.subr.mxu0 0.0
    %188 = vmatpush1.msra.mxu0 0.0
    %189 = vmatprep.subr.mxu0 0.0
    %190 = vmatpush1.msra.mxu0 0.0
    %191 = vmatprep.subr.mxu0 0.0
    %192 = vmatpush1.msra.mxu0 0.0
    %193 = vmatprep.mubr.f32.mxu0 0.0
    %194 = vmatmul.mubr.f32.gmra.mrb[0].mxu0 %v124
    %v195 = vpop.f32.mrb[0].mxu0
    %v196 = vadd.f32 %v105, %v195
    %v197 = vpop.f32.mrb[0].mxu0
    %v198 = vadd.f32 %v109, %v197
    %199 = vmatprep.mubr.f32.mxu0 0.0
    %200 = vmatmul.mubr.f32.gmra.mrb[0].mxu0 %v127
    %v201 = vpop.f32.mrb[0].mxu0
    %v202 = vadd.f32 %v105, %v201
    %v203 = vpop.f32.mrb[0].mxu0
    %v204 = vadd.f32 %v109, %v203
    %205 = vdwg.mxu0
    %206 = vmatprep.subr.mxu0 %v87
    %207 = vmatpush1.msra.mxu0 %v86
    %208 = vmatprep.subr.mxu0 %v91
    %209 = vmatpush1.msra.mxu0 %v90
    %210 = vmatprep.subr.mxu0 %v95
    %211 = vmatpush1.msra.mxu0 %v94
    %212 = vmatprep.subr.mxu0 %v99
    %213 = vmatpush1.msra.mxu0 %v98
    %214 = vmatprep.subr.mxu0 0.0
    %215 = vmatpush1.msra.mxu0 0.0
    %216 = vmatprep.subr.mxu0 0.0
    %217 = vmatpush1.msra.mxu0 0.0
    %218 = vmatprep.subr.mxu0 0.0
    %219 = vmatpush1.msra.mxu0 0.0
    %220 = vmatprep.subr.mxu0 0.0
    %221 = vmatpush1.msra.mxu0 0.0
    %222 = vmatprep.subr.mxu0 0.0
    %223 = vmatpush1.msra.mxu0 0.0
    %224 = vmatprep.subr.mxu0 0.0
    %225 = vmatpush1.msra.mxu0 0.0
    %226 = vmatprep.subr.mxu0 0.0
    %227 = vmatpush1.msra.mxu0 0.0
    %228 = vmatprep.subr.mxu0 0.0
    %229 = vmatpush1.msra.mxu0 0.0
    %230 = vmatprep.subr.mxu0 0.0
    %231 = vmatpush1.msra.mxu0 0.0
    %232 = vmatprep.subr.mxu0 0.0
    %233 = vmatpush1.msra.mxu0 0.0
    %234 = vmatprep.subr.mxu0 0.0
    %235 = vmatpush1.msra.mxu0 0.0
    %236 = vmatprep.subr.mxu0 0.0
    %237 = vmatpush1.msra.mxu0 0.0
    %238 = vmatprep.subr.mxu0 0.0
    %239 = vmatpush1.msra.mxu0 0.0
    %240 = vmatprep.subr.mxu0 0.0
    %241 = vmatpush1.msra.mxu0 0.0
    %242 = vmatprep.subr.mxu0 0.0
    %243 = vmatpush1.msra.mxu0 0.0
    %244 = vmatprep.subr.mxu0 0.0
    %245 = vmatpush1.msra.mxu0 0.0
    %246 = vmatprep.subr.mxu0 0.0
    %247 = vmatpush1.msra.mxu0 0.0
    %248 = vmatprep.subr.mxu0 0.0
    %249 = vmatpush1.msra.mxu0 0.0
    %250 = vmatprep.subr.mxu0 0.0
    %251 = vmatpush1.msra.mxu0 0.0
    %252 = vmatprep.subr.mxu0 0.0
    %253 = vmatpush1.msra.mxu0 0.0
    %254 = vmatprep.subr.mxu0 0.0
    %255 = vmatpush1.msra.mxu0 0.0
    %256 = vmatprep.subr.mxu0 0.0
    %257 = vmatpush1.msra.mxu0 0.0
    %258 = vmatprep.subr.mxu0 0.0
    %259 = vmatpush1.msra.mxu0 0.0
    %260 = vmatprep.subr.mxu0 0.0
    %261 = vmatpush1.msra.mxu0 0.0
    %262 = vmatprep.subr.mxu0 0.0
    %263 = vmatpush1.msra.mxu0 0.0
    %264 = vmatprep.subr.mxu0 0.0
    %265 = vmatpush1.msra.mxu0 0.0
    %266 = vmatprep.subr.mxu0 0.0
    %267 = vmatpush1.msra.mxu0 0.0
    %268 = vmatprep.subr.mxu0 0.0
    %269 = vmatpush1.msra.mxu0 0.0
    %270 = vmatprep.mubr.f32.mxu0 0.0
    %271 = vmatmul.mubr.f32.gmra.mrb[0].mxu0 %v124
    %v272 = vpop.f32.mrb[0].mxu0
    %v273 = vadd.f32 %v113, %v272
    %v274 = vpop.f32.mrb[0].mxu0
    %v275 = vadd.f32 %v117, %v274
    %276 = vmatprep.mubr.f32.mxu0 0.0
    %277 = vmatmul.mubr.f32.gmra.mrb[0].mxu0 %v127
    %v278 = vpop.f32.mrb[0].mxu0
    %v279 = vadd.f32 %v113, %v278
    %v280 = vpop.f32.mrb[0].mxu0
    %v281 = vadd.f32 %v117, %v280
    %282 = vdwg.mxu0
    %vm283 = vcmp.gt.f32.partialorder %v196, 0.0
    %vm284 = vcmp.gt.f32.partialorder %v198, 0.0
    %vm285 = vcmp.gt.f32.partialorder %v273, 0.0
    %vm286 = vcmp.gt.f32.partialorder %v275, 0.0
    %vm287 = vcmp.gt.f32.partialorder %v202, 0.0
    %vm288 = vcmp.gt.f32.partialorder %v204, 0.0
    %vm289 = vcmp.gt.f32.partialorder %v279, 0.0
    %vm290 = vcmp.gt.f32.partialorder %v281, 0.0
    %v291 = vmul.f32 %v196, 0.01
    %v292 = vmul.f32 %v198, 0.01
    %v293 = vmul.f32 %v273, 0.01
    %v294 = vmul.f32 %v275, 0.01
    %v295 = vmul.f32 %v202, 0.01
    %v296 = vmul.f32 %v204, 0.01
    %v297 = vmul.f32 %v279, 0.01
    %v298 = vmul.f32 %v281, 0.01
    %v299 = vsel %vm283, %v196, %v291
    %v300 = vsel %vm284, %v198, %v292
    %v301 = vsel %vm285, %v273, %v293
    %v302 = vsel %vm286, %v275, %v294
    %v303 = vsel %vm287, %v202, %v295
    %v304 = vsel %vm288, %v204, %v296
    %v305 = vsel %vm289, %v279, %v297
    %v306 = vsel %vm290, %v281, %v298
    %v307 = vld [vmem:[#allocation8] sm:$0xff]
    %v308 = vld [vmem:[#allocation8 + $0x8] sm:$0xff]
    %v309 = vld [vmem:[#allocation8 + $0x10] sm:$0xff]
    %v310 = vld [vmem:[#allocation8 + $0x18] sm:$0xff]
    %v311 = vld [vmem:[#allocation8 + $0x20] sm:$0xff]
    %v312 = vld [vmem:[#allocation8 + $0x28] sm:$0xff]
    %v313 = vld [vmem:[#allocation8 + $0x30] sm:$0xff]
    %v314 = vld [vmem:[#allocation8 + $0x38] sm:$0xff]
    %v315 = vld [vmem:[#allocation8 + $0x40] sm:$0xff]
    %v316 = vld [vmem:[#allocation8 + $0x48] sm:$0xff]
    %v317 = vld [vmem:[#allocation8 + $0x50] sm:$0xff]
    %v318 = vld [vmem:[#allocation8 + $0x58] sm:$0xff]
    %v319 = vld [vmem:[#allocation8 + $0x60] sm:$0xff]
    %v320 = vld [vmem:[#allocation8 + $0x68] sm:$0xff]
    %v321 = vld [vmem:[#allocation8 + $0x70] sm:$0xff]
    %v322 = vld [vmem:[#allocation8 + $0x78] sm:$0xff]
    %v323 = vld [vmem:[#allocation8 + $0x80] sm:$0xff]
    %v324 = vld [vmem:[#allocation8 + $0x88] sm:$0xff]
    %v325 = vld [vmem:[#allocation8 + $0x90] sm:$0xff]
    %v326 = vld [vmem:[#allocation8 + $0x98] sm:$0xff]
    %v327 = vld [vmem:[#allocation8 + $0xa0] sm:$0xff]
    %v328 = vld [vmem:[#allocation8 + $0xa8] sm:$0xff]
    %v329 = vld [vmem:[#allocation8 + $0xb0] sm:$0xff]
    %v330 = vld [vmem:[#allocation8 + $0xb8] sm:$0xff]
    %v331 = vld [vmem:[#allocation8 + $0xc0] sm:$0xff]
    %v332 = vld [vmem:[#allocation8 + $0xc8] sm:$0xff]
    %v333 = vld [vmem:[#allocation8 + $0xd0] sm:$0xff]
    %v334 = vld [vmem:[#allocation8 + $0xd8] sm:$0xff]
    %v335 = vld [vmem:[#allocation8 + $0xe0] sm:$0xff]
    %v336 = vld [vmem:[#allocation8 + $0xe8] sm:$0xff]
    %v337 = vld [vmem:[#allocation8 + $0xf0] sm:$0xff]
    %v338 = vld [vmem:[#allocation8 + $0xf8] sm:$0xff]
    %v339 = vld [vmem:[#allocation8 + $0x100] sm:$0xff]
    %v340 = vld [vmem:[#allocation8 + $0x108] sm:$0xff]
    %v341 = vld [vmem:[#allocation8 + $0x110] sm:$0xff]
    %v342 = vld [vmem:[#allocation8 + $0x118] sm:$0xff]
    %v343 = vld [vmem:[#allocation8 + $0x120] sm:$0xff]
    %v344 = vld [vmem:[#allocation8 + $0x128] sm:$0xff]
    %v345 = vld [vmem:[#allocation8 + $0x130] sm:$0xff]
    %v346 = vld [vmem:[#allocation8 + $0x138] sm:$0xff]
    %v347 = vld [vmem:[#allocation8 + $0x140] sm:$0xff]
    %v348 = vld [vmem:[#allocation8 + $0x148] sm:$0xff]
    %v349 = vld [vmem:[#allocation8 + $0x150] sm:$0xff]
    %v350 = vld [vmem:[#allocation8 + $0x158] sm:$0xff]
    %v351 = vld [vmem:[#allocation8 + $0x160] sm:$0xff]
    %v352 = vld [vmem:[#allocation8 + $0x168] sm:$0xff]
    %v353 = vld [vmem:[#allocation8 + $0x170] sm:$0xff]
    %v354 = vld [vmem:[#allocation8 + $0x178] sm:$0xff]
    %v355 = vld [vmem:[#allocation8 + $0x180] sm:$0xff]
    %v356 = vld [vmem:[#allocation8 + $0x188] sm:$0xff]
    %v357 = vld [vmem:[#allocation8 + $0x190] sm:$0xff]
    %v358 = vld [vmem:[#allocation8 + $0x198] sm:$0xff]
    %v359 = vld [vmem:[#allocation8 + $0x1a0] sm:$0xff]
    %v360 = vld [vmem:[#allocation8 + $0x1a8] sm:$0xff]
    %v361 = vld [vmem:[#allocation8 + $0x1b0] sm:$0xff]
    %v362 = vld [vmem:[#allocation8 + $0x1b8] sm:$0xff]
    %v363 = vld [vmem:[#allocation8 + $0x1c0] sm:$0xff]
    %v364 = vld [vmem:[#allocation8 + $0x1c8] sm:$0xff]
    %v365 = vld [vmem:[#allocation8 + $0x1d0] sm:$0xff]
    %v366 = vld [vmem:[#allocation8 + $0x1d8] sm:$0xff]
    %v367 = vld [vmem:[#allocation8 + $0x1e0] sm:$0xff]
    %v368 = vld [vmem:[#allocation8 + $0x1e8] sm:$0xff]
    %v369 = vld [vmem:[#allocation8 + $0x1f0] sm:$0xff]
    %v370 = vld [vmem:[#allocation8 + $0x1f8] sm:$0xff]
    %v371 = vld [vmem:[#allocation8 + $0x200] sm:$0xff]
    %v372 = vld [vmem:[#allocation8 + $0x208] sm:$0xff]
    %v373 = vld [vmem:[#allocation8 + $0x210] sm:$0xff]
    %v374 = vld [vmem:[#allocation8 + $0x218] sm:$0xff]
    %v375 = vld [vmem:[#allocation8 + $0x220] sm:$0xff]
    %v376 = vld [vmem:[#allocation8 + $0x228] sm:$0xff]
    %v377 = vld [vmem:[#allocation8 + $0x230] sm:$0xff]
    %v378 = vld [vmem:[#allocation8 + $0x238] sm:$0xff]
    %v379 = vld [vmem:[#allocation8 + $0x240] sm:$0xff]
    %v380 = vld [vmem:[#allocation8 + $0x248] sm:$0xff]
    %v381 = vld [vmem:[#allocation8 + $0x250] sm:$0xff]
    %v382 = vld [vmem:[#allocation8 + $0x258] sm:$0xff]
    %v383 = vld [vmem:[#allocation8 + $0x260] sm:$0xff]
    %v384 = vld [vmem:[#allocation8 + $0x268] sm:$0xff]
    %v385 = vld [vmem:[#allocation8 + $0x270] sm:$0xff]
    %v386 = vld [vmem:[#allocation8 + $0x278] sm:$0xff]
    %v387 = vld [vmem:[#allocation8 + $0x280] sm:$0xff]
    %v388 = vld [vmem:[#allocation8 + $0x288] sm:$0xff]
    %v389 = vld [vmem:[#allocation8 + $0x290] sm:$0xff]
    %v390 = vld [vmem:[#allocation8 + $0x298] sm:$0xff]
    %v391 = vld [vmem:[#allocation8 + $0x2a0] sm:$0xff]
    %v392 = vld [vmem:[#allocation8 + $0x2a8] sm:$0xff]
    %v393 = vld [vmem:[#allocation8 + $0x2b0] sm:$0xff]
    %v394 = vld [vmem:[#allocation8 + $0x2b8] sm:$0xff]
    %v395 = vld [vmem:[#allocation8 + $0x2c0] sm:$0xff]
    %v396 = vld [vmem:[#allocation8 + $0x2c8] sm:$0xff]
    %v397 = vld [vmem:[#allocation8 + $0x2d0] sm:$0xff]
    %v398 = vld [vmem:[#allocation8 + $0x2d8] sm:$0xff]
    %v399 = vld [vmem:[#allocation8 + $0x2e0] sm:$0xff]
    %v400 = vld [vmem:[#allocation8 + $0x2e8] sm:$0xff]
    %v401 = vld [vmem:[#allocation8 + $0x2f0] sm:$0xff]
    %v402 = vld [vmem:[#allocation8 + $0x2f8] sm:$0xff]
    %v403 = vld [vmem:[#allocation8 + $0x300] sm:$0xff]
    %v404 = vld [vmem:[#allocation8 + $0x308] sm:$0xff]
    %v405 = vld [vmem:[#allocation8 + $0x310] sm:$0xff]
    %v406 = vld [vmem:[#allocation8 + $0x318] sm:$0xff]
    %v407 = vld [vmem:[#allocation8 + $0x320] sm:$0xff]
    %v408 = vld [vmem:[#allocation8 + $0x328] sm:$0xff]
    %v409 = vld [vmem:[#allocation8 + $0x330] sm:$0xff]
    %v410 = vld [vmem:[#allocation8 + $0x338] sm:$0xff]
    %v411 = vld [vmem:[#allocation8 + $0x340] sm:$0xff]
    %v412 = vld [vmem:[#allocation8 + $0x348] sm:$0xff]
    %v413 = vld [vmem:[#allocation8 + $0x350] sm:$0xff]
    %v414 = vld [vmem:[#allocation8 + $0x358] sm:$0xff]
    %v415 = vld [vmem:[#allocation8 + $0x360] sm:$0xff]
    %v416 = vld [vmem:[#allocation8 + $0x368] sm:$0xff]
    %v417 = vld [vmem:[#allocation8 + $0x370] sm:$0xff]
    %v418 = vld [vmem:[#allocation8 + $0x378] sm:$0xff]
    %v419 = vld [vmem:[#allocation8 + $0x380] sm:$0xff]
    %v420 = vld [vmem:[#allocation8 + $0x388] sm:$0xff]
    %v421 = vld [vmem:[#allocation8 + $0x390] sm:$0xff]
    %v422 = vld [vmem:[#allocation8 + $0x398] sm:$0xff]
    %v423 = vld [vmem:[#allocation8 + $0x3a0] sm:$0xff]
    %v424 = vld [vmem:[#allocation8 + $0x3a8] sm:$0xff]
    %v425 = vld [vmem:[#allocation8 + $0x3b0] sm:$0xff]
    %v426 = vld [vmem:[#allocation8 + $0x3b8] sm:$0xff]
    %v427 = vld [vmem:[#allocation8 + $0x3c0] sm:$0xff]
    %v428 = vld [vmem:[#allocation8 + $0x3c8] sm:$0xff]
    %v429 = vld [vmem:[#allocation8 + $0x3d0] sm:$0xff]
    %v430 = vld [vmem:[#allocation8 + $0x3d8] sm:$0xff]
    %v431 = vld [vmem:[#allocation8 + $0x3e0] sm:$0xff]
    %v432 = vld [vmem:[#allocation8 + $0x3e8] sm:$0xff]
    %v433 = vld [vmem:[#allocation8 + $0x3f0] sm:$0xff]
    %v434 = vld [vmem:[#allocation8 + $0x3f8] sm:$0xff]
    %s435 = sld [smem:[#allocation2]]
    %v436 = vstv %s435
    %437 = vmatprep.subr.mxu0 %v308
    %438 = vmatpush1.msra.mxu0 %v307
    %439 = vmatprep.subr.mxu0 %v310
    %440 = vmatpush1.msra.mxu0 %v309
    %441 = vmatprep.subr.mxu0 %v312
    %442 = vmatpush1.msra.mxu0 %v311
    %443 = vmatprep.subr.mxu0 %v314
    %444 = vmatpush1.msra.mxu0 %v313
    %445 = vmatprep.subr.mxu0 %v316
    %446 = vmatpush1.msra.mxu0 %v315
    %447 = vmatprep.subr.mxu0 %v318
    %448 = vmatpush1.msra.mxu0 %v317
    %449 = vmatprep.subr.mxu0 %v320
    %450 = vmatpush1.msra.mxu0 %v319
    %451 = vmatprep.subr.mxu0 %v322
    %452 = vmatpush1.msra.mxu0 %v321
    %453 = vmatprep.subr.mxu0 %v324
    %454 = vmatpush1.msra.mxu0 %v323
    %455 = vmatprep.subr.mxu0 %v326
    %456 = vmatpush1.msra.mxu0 %v325
    %457 = vmatprep.subr.mxu0 %v328
    %458 = vmatpush1.msra.mxu0 %v327
    %459 = vmatprep.subr.mxu0 %v330
    %460 = vmatpush1.msra.mxu0 %v329
    %461 = vmatprep.subr.mxu0 %v332
    %462 = vmatpush1.msra.mxu0 %v331
    %463 = vmatprep.subr.mxu0 %v334
    %464 = vmatpush1.msra.mxu0 %v333
    %465 = vmatprep.subr.mxu0 %v336
    %466 = vmatpush1.msra.mxu0 %v335
    %467 = vmatprep.subr.mxu0 %v338
    %468 = vmatpush1.msra.mxu0 %v337
    %469 = vmatprep.subr.mxu0 %v340
    %470 = vmatpush1.msra.mxu0 %v339
    %471 = vmatprep.subr.mxu0 %v342
    %472 = vmatpush1.msra.mxu0 %v341
    %473 = vmatprep.subr.mxu0 %v344
    %474 = vmatpush1.msra.mxu0 %v343
    %475 = vmatprep.subr.mxu0 %v346
    %476 = vmatpush1.msra.mxu0 %v345
    %477 = vmatprep.subr.mxu0 %v348
    %478 = vmatpush1.msra.mxu0 %v347
    %479 = vmatprep.subr.mxu0 %v350
    %480 = vmatpush1.msra.mxu0 %v349
    %481 = vmatprep.subr.mxu0 %v352
    %482 = vmatpush1.msra.mxu0 %v351
    %483 = vmatprep.subr.mxu0 %v354
    %484 = vmatpush1.msra.mxu0 %v353
    %485 = vmatprep.subr.mxu0 %v356
    %486 = vmatpush1.msra.mxu0 %v355
    %487 = vmatprep.subr.mxu0 %v358
    %488 = vmatpush1.msra.mxu0 %v357
    %489 = vmatprep.subr.mxu0 %v360
    %490 = vmatpush1.msra.mxu0 %v359
    %491 = vmatprep.subr.mxu0 %v362
    %492 = vmatpush1.msra.mxu0 %v361
    %493 = vmatprep.subr.mxu0 %v364
    %494 = vmatpush1.msra.mxu0 %v363
    %495 = vmatprep.subr.mxu0 %v366
    %496 = vmatpush1.msra.mxu0 %v365
    %497 = vmatprep.subr.mxu0 %v368
    %498 = vmatpush1.msra.mxu0 %v367
    %499 = vmatprep.subr.mxu0 %v370
    %500 = vmatpush1.msra.mxu0 %v369
    %501 = vmatprep.mubr.f32.mxu0 %v300
    %502 = vmatmul.mubr.f32.gmra.mrb[0].mxu0 %v299
    %v503 = vpop.f32.mrb[0].mxu0
    %v504 = vadd.f32 %v436, %v503
    %v505 = vpop.f32.mrb[0].mxu0
    %v506 = vadd.f32 %v436, %v505
    %507 = vmatprep.mubr.f32.mxu0 %v304
    %508 = vmatmul.mubr.f32.gmra.mrb[0].mxu0 %v303
    %v509 = vpop.f32.mrb[0].mxu0
    %v510 = vadd.f32 %v436, %v509
    %v511 = vpop.f32.mrb[0].mxu0
    %v512 = vadd.f32 %v436, %v511
    %513 = vdwg.mxu0
    %514 = vmatprep.subr.mxu0 %v372
    %515 = vmatpush1.msra.mxu0 %v371
    %516 = vmatprep.subr.mxu0 %v374
    %517 = vmatpush1.msra.mxu0 %v373
    %518 = vmatprep.subr.mxu0 %v376
    %519 = vmatpush1.msra.mxu0 %v375
    %520 = vmatprep.subr.mxu0 %v378
    %521 = vmatpush1.msra.mxu0 %v377
    %522 = vmatprep.subr.mxu0 %v380
    %523 = vmatpush1.msra.mxu0 %v379
    %524 = vmatprep.subr.mxu0 %v382
    %525 = vmatpush1.msra.mxu0 %v381
    %526 = vmatprep.subr.mxu0 %v384
    %527 = vmatpush1.msra.mxu0 %v383
    %528 = vmatprep.subr.mxu0 %v386
    %529 = vmatpush1.msra.mxu0 %v385
    %530 = vmatprep.subr.mxu0 %v388
    %531 = vmatpush1.msra.mxu0 %v387
    %532 = vmatprep.subr.mxu0 %v390
    %533 = vmatpush1.msra.mxu0 %v389
    %534 = vmatprep.subr.mxu0 %v392
    %535 = vmatpush1.msra.mxu0 %v391
    %536 = vmatprep.subr.mxu0 %v394
    %537 = vmatpush1.msra.mxu0 %v393
    %538 = vmatprep.subr.mxu0 %v396
    %539 = vmatpush1.msra.mxu0 %v395
    %540 = vmatprep.subr.mxu0 %v398
    %541 = vmatpush1.msra.mxu0 %v397
    %542 = vmatprep.subr.mxu0 %v400
    %543 = vmatpush1.msra.mxu0 %v399
    %544 = vmatprep.subr.mxu0 %v402
    %545 = vmatpush1.msra.mxu0 %v401
    %546 = vmatprep.subr.mxu0 %v404
    %547 = vmatpush1.msra.mxu0 %v403
    %548 = vmatprep.subr.mxu0 %v406
    %549 = vmatpush1.msra.mxu0 %v405
    %550 = vmatprep.subr.mxu0 %v408
    %551 = vmatpush1.msra.mxu0 %v407
    %552 = vmatprep.subr.mxu0 %v410
    %553 = vmatpush1.msra.mxu0 %v409
    %554 = vmatprep.subr.mxu0 %v412
    %555 = vmatpush1.msra.mxu0 %v411
    %556 = vmatprep.subr.mxu0 %v414
    %557 = vmatpush1.msra.mxu0 %v413
    %558 = vmatprep.subr.mxu0 %v416
    %559 = vmatpush1.msra.mxu0 %v415
    %560 = vmatprep.subr.mxu0 %v418
    %561 = vmatpush1.msra.mxu0 %v417
    %562 = vmatprep.subr.mxu0 %v420
    %563 = vmatpush1.msra.mxu0 %v419
    %564 = vmatprep.subr.mxu0 %v422
    %565 = vmatpush1.msra.mxu0 %v421
    %566 = vmatprep.subr.mxu0 %v424
    %567 = vmatpush1.msra.mxu0 %v423
    %568 = vmatprep.subr.mxu0 %v426
    %569 = vmatpush1.msra.mxu0 %v425
    %570 = vmatprep.subr.mxu0 %v428
    %571 = vmatpush1.msra.mxu0 %v427
    %572 = vmatprep.subr.mxu0 %v430
    %573 = vmatpush1.msra.mxu0 %v429
    %574 = vmatprep.subr.mxu0 %v432
    %575 = vmatpush1.msra.mxu0 %v431
    %576 = vmatprep.subr.mxu0 %v434
    %577 = vmatpush1.msra.mxu0 %v433
    %578 = vmatprep.mubr.f32.mxu0 %v302
    %579 = vmatmul.mubr.f32.gmra.mrb[0].mxu0 %v301
    %v580 = vpop.f32.mrb[0].mxu0
    %v581 = vadd.f32 %v504, %v580
    %v582 = vpop.f32.mrb[0].mxu0
    %v583 = vadd.f32 %v506, %v582
    %584 = vmatprep.mubr.f32.mxu0 %v306
    %585 = vmatmul.mubr.f32.gmra.mrb[0].mxu0 %v305
    %v586 = vpop.f32.mrb[0].mxu0
    %v587 = vadd.f32 %v510, %v586
    %v588 = vpop.f32.mrb[0].mxu0
    %v589 = vadd.f32 %v512, %v588
    %590 = vdwg.mxu0
    %v591 = vxor.u32 %v581, 2147483648
    %v592 = vxor.u32 %v583, 2147483648
    %v593 = vxor.u32 %v587, 2147483648
    %v594 = vxor.u32 %v589, 2147483648
    %v595 = vmul.f32 %v591, 1.442695
    %v596 = vpow.pop %v595
    %v597 = vmul.f32 %v592, 1.442695
    %v598 = vpow.pop %v597
    %v599 = vmul.f32 %v593, 1.442695
    %v600 = vpow.pop %v599
    %v601 = vmul.f32 %v594, 1.442695
    %v602 = vpow.pop %v601
    %v603 = vadd.f32 %v596, 1.0
    %v604 = vadd.f32 %v598, 1.0
    %v605 = vadd.f32 %v600, 1.0
    %v606 = vadd.f32 %v602, 1.0
    %v607 = vrcp.pop %v603
    %v608 = vmul.f32 1.0, %v607
    %v609 = vrcp.pop %v604
    %v610 = vmul.f32 1.0, %v609
    %v611 = vrcp.pop %v605
    %v612 = vmul.f32 1.0, %v611
    %v613 = vrcp.pop %v606
    %v614 = vmul.f32 1.0, %v613
    %v615 = vsub.f32 %v299, %v301
    %v616 = vsub.f32 %v300, %v302
    %v617 = vsub.f32 %v303, %v305
    %v618 = vsub.f32 %v304, %v306
    %v619 = vmul.f32 %v608, %v615
    %v620 = vmul.f32 %v610, %v616
    %v621 = vmul.f32 %v612, %v617
    %v622 = vmul.f32 %v614, %v618
    %v623 = vadd.f32 %v301, %v619
    %v624 = vadd.f32 %v302, %v620
    %v625 = vadd.f32 %v305, %v621
    %v626 = vadd.f32 %v306, %v622
    %627 = vst [vmem:[%s6] sm:$0xff] %v623
    %628 = vst [vmem:[%s6 + $0x8] sm:$0xff] %v624
    %629 = vst [vmem:[%s6 + $0x10] sm:$0xff] %v625
    %630 = vst [vmem:[%s6 + $0x18] sm:$0xff] %v626
    %v631 = vld [vmem:[#allocation9] sm:$0xff]
    %v632 = vld [vmem:[#allocation9 + $0x8] sm:$0xff]
    %v633 = vld [vmem:[#allocation9 + $0x10] sm:$0xff]
    %v634 = vld [vmem:[#allocation9 + $0x18] sm:$0xff]
    %v635 = vld [vmem:[#allocation9 + $0x20] sm:$0xff]
    %v636 = vld [vmem:[#allocation9 + $0x28] sm:$0xff]
    %v637 = vld [vmem:[#allocation9 + $0x30] sm:$0xff]
    %v638 = vld [vmem:[#allocation9 + $0x38] sm:$0xff]
    %v639 = vld [vmem:[#allocation9 + $0x40] sm:$0xff]
    %v640 = vld [vmem:[#allocation9 + $0x48] sm:$0xff]
    %v641 = vld [vmem:[#allocation9 + $0x50] sm:$0xff]
    %v642 = vld [vmem:[#allocation9 + $0x58] sm:$0xff]
    %v643 = vld [vmem:[#allocation9 + $0x60] sm:$0xff]
    %v644 = vld [vmem:[#allocation9 + $0x68] sm:$0xff]
    %v645 = vld [vmem:[#allocation9 + $0x70] sm:$0xff]
    %v646 = vld [vmem:[#allocation9 + $0x78] sm:$0xff]
    %v647 = vld [vmem:[#allocation9 + $0x80] sm:$0xff]
    %v648 = vld [vmem:[#allocation9 + $0x88] sm:$0xff]
    %v649 = vld [vmem:[#allocation9 + $0x90] sm:$0xff]
    %v650 = vld [vmem:[#allocation9 + $0x98] sm:$0xff]
    %v651 = vld [vmem:[#allocation9 + $0xa0] sm:$0xff]
    %v652 = vld [vmem:[#allocation9 + $0xa8] sm:$0xff]
    %v653 = vld [vmem:[#allocation9 + $0xb0] sm:$0xff]
    %v654 = vld [vmem:[#allocation9 + $0xb8] sm:$0xff]
    %v655 = vld [vmem:[#allocation9 + $0xc0] sm:$0xff]
    %v656 = vld [vmem:[#allocation9 + $0xc8] sm:$0xff]
    %v657 = vld [vmem:[#allocation9 + $0xd0] sm:$0xff]
    %v658 = vld [vmem:[#allocation9 + $0xd8] sm:$0xff]
    %v659 = vld [vmem:[#allocation9 + $0xe0] sm:$0xff]
    %v660 = vld [vmem:[#allocation9 + $0xe8] sm:$0xff]
    %v661 = vld [vmem:[#allocation9 + $0xf0] sm:$0xff]
    %v662 = vld [vmem:[#allocation9 + $0xf8] sm:$0xff]
    %663 = vmatprep.subr.mxu0 0.0
    %664 = vmatpush1.msra.mxu0 %v631
    %665 = vmatprep.subr.mxu0 0.0
    %666 = vmatpush1.msra.mxu0 %v632
    %667 = vmatprep.subr.mxu0 0.0
    %668 = vmatpush1.msra.mxu0 %v633
    %669 = vmatprep.subr.mxu0 0.0
    %670 = vmatpush1.msra.mxu0 %v634
    %671 = vmatprep.subr.mxu0 0.0
    %672 = vmatpush1.msra.mxu0 %v635
    %673 = vmatprep.subr.mxu0 0.0
    %674 = vmatpush1.msra.mxu0 %v636
    %675 = vmatprep.subr.mxu0 0.0
    %676 = vmatpush1.msra.mxu0 %v637
    %677 = vmatprep.subr.mxu0 0.0
    %678 = vmatpush1.msra.mxu0 %v638
    %679 = vmatprep.subr.mxu0 0.0
    %680 = vmatpush1.msra.mxu0 %v639
    %681 = vmatprep.subr.mxu0 0.0
    %682 = vmatpush1.msra.mxu0 %v640
    %683 = vmatprep.subr.mxu0 0.0
    %684 = vmatpush1.msra.mxu0 %v641
    %685 = vmatprep.subr.mxu0 0.0
    %686 = vmatpush1.msra.mxu0 %v642
    %687 = vmatprep.subr.mxu0 0.0
    %688 = vmatpush1.msra.mxu0 %v643
    %689 = vmatprep.subr.mxu0 0.0
    %690 = vmatpush1.msra.mxu0 %v644
    %691 = vmatprep.subr.mxu0 0.0
    %692 = vmatpush1.msra.mxu0 %v645
    %693 = vmatprep.subr.mxu0 0.0
    %694 = vmatpush1.msra.mxu0 %v646
    %695 = vmatprep.subr.mxu0 0.0
    %696 = vmatpush1.msra.mxu0 %v647
    %697 = vmatprep.subr.mxu0 0.0
    %698 = vmatpush1.msra.mxu0 %v648
    %699 = vmatprep.subr.mxu0 0.0
    %700 = vmatpush1.msra.mxu0 %v649
    %701 = vmatprep.subr.mxu0 0.0
    %702 = vmatpush1.msra.mxu0 %v650
    %703 = vmatprep.subr.mxu0 0.0
    %704 = vmatpush1.msra.mxu0 %v651
    %705 = vmatprep.subr.mxu0 0.0
    %706 = vmatpush1.msra.mxu0 %v652
    %707 = vmatprep.subr.mxu0 0.0
    %708 = vmatpush1.msra.mxu0 %v653
    %709 = vmatprep.subr.mxu0 0.0
    %710 = vmatpush1.msra.mxu0 %v654
    %711 = vmatprep.subr.mxu0 0.0
    %712 = vmatpush1.msra.mxu0 %v655
    %713 = vmatprep.subr.mxu0 0.0
    %714 = vmatpush1.msra.mxu0 %v656
    %715 = vmatprep.subr.mxu0 0.0
    %716 = vmatpush1.msra.mxu0 %v657
    %717 = vmatprep.subr.mxu0 0.0
    %718 = vmatpush1.msra.mxu0 %v658
    %719 = vmatprep.subr.mxu0 0.0
    %720 = vmatpush1.msra.mxu0 %v659
    %721 = vmatprep.subr.mxu0 0.0
    %722 = vmatpush1.msra.mxu0 %v660
    %723 = vmatprep.subr.mxu0 0.0
    %724 = vmatpush1.msra.mxu0 %v661
    %725 = vmatprep.subr.mxu0 0.0
    %726 = vmatpush1.msra.mxu0 %v662
    %727 = vmatprep.mubr.f32.mxu0 %v610
    %728 = vmatmul.mubr.f32.gmra.mrb[0].mxu0 %v608
    %v729 = vpop.f32.mrb[0].mxu0
    %v730 = vadd.f32 0.0, %v729
    %v731 = vpop.f32.mrb[0].mxu0
    %732 = vmatprep.mubr.f32.mxu0 %v614
    %733 = vmatmul.mubr.f32.gmra.mrb[0].mxu0 %v612
    %v734 = vpop.f32.mrb[0].mxu0
    %v735 = vadd.f32 0.0, %v734
    %v736 = vpop.f32.mrb[0].mxu0
    %737 = vdwg.mxu0
    %vm738 = vcmask 130048
    %739 = vst.msk [vmem:[#allocation11] sm:$0xff] %vm738, %v730
    %740 = vst.msk [vmem:[#allocation11 + $0x8] sm:$0xff] %vm738, %v735
    // Predicated region
    $region42: #{forward.1} parent=1 // pred_check
      _
    $region43: #{forward.1} parent=1 // pred_check_branch
      %742 = sbr.rel (0) target = $region45
    $region44: #{forward.1} parent=1 // pred_region
      _
    $region45: #{forward.1} parent=1 // pred_fallthru
      _
    // Predicated region
    $region46: #{forward.1} parent=1 // pred_check
      _
    $region47: #{forward.1} parent=1 // pred_check_branch
      %744 = sbr.rel (0) target = $region49
    $region48: #{forward.1} parent=1 // pred_region
      %s746 = ssub.s32 256, 256
      %747 = vsyncadd [#allocation5], %s746
      %s748 = sshll.u32 [#allocation11], 4
      %s749 = int_to_ptr.vmem [resolvable:$true] %s748
      %754 = dma.vmem_to_hbm [thread:$0]  %s749, 256, %s7, [#allocation5], 128, 128, 8
    $region49: #{forward.1} parent=1 // pred_fallthru
      _
    // Predicated region
    $region50: #{forward.1} parent=1 // pred_check
      _
    $region51: #{forward.1} parent=1 // pred_check_branch
      %756 = sbr.rel (0) target = $region53
    $region52: #{forward.1} parent=1 // pred_region
      _
    $region53: #{forward.1} parent=1 // pred_fallthru
      _
    // Predicated region
    $region54: #{forward.1} parent=1 // pred_check
      _
    $region55: #{forward.1} parent=1 // pred_check_branch
      %758 = sbr.rel (0) target = $region57
    $region56: #{forward.1} parent=1 // pred_region
      %759 = dma.done [#allocation5], 256
    $region57: #{forward.1} parent=1 // pred_fallthru
      _
    %760 = vsyncpa [#allocation4], 1
    %761 = vsyncpa [#allocation7], 1
    %762 = vsyncpa [#allocation10], 1
    %763 = vsyncpa [#allocation5], 1

</llo_original>
